<compile_context>
chip_gen: v7x
topology: tpu7x:2x2x1
jax: 0.10.0
libtpu: 0.0.40
codegen_flags: <defaults>
</compile_context>

<pallas_src>
import math

import jax
import jax.numpy as jnp
from jax.experimental import pallas as pl
from jax.experimental.pallas import tpu as pltpu


def _round_up(x, m):
    return ((x + m - 1) // m) * m


def _pick_tile(dim, target, align):
    """Return (tile, padded_dim): tile is a multiple of `align` that divides
    padded_dim; small dims collapse to a single aligned tile."""
    aligned = _round_up(dim, align)
    if aligned <= target:
        return aligned, aligned
    return target, _round_up(dim, target)


def _pick_k_tile(in_dim, target):
    """Pick (tk, k_pad), preferring a tile that divides in_dim exactly so the
    per-call activation never needs a K-padding copy (common aligned case)."""
    target = _round_up(target, 128)
    if in_dim % 128 != 0:
        return _pick_tile(in_dim, target, 128)
    if in_dim <= 2 * target:
        return in_dim, in_dim
    for cand in range(target, 127, -128):
        if in_dim % cand == 0:
            return cand, in_dim
    return _pick_tile(in_dim, target, 128)          # unreachable in practice


def _lora_linear_kernel(x_ref, wT_ref, aT_ref, bT_ref, bias_ref, o_ref,
                        acc_ref, xa_ref):
    """grid = (M tiles, N tiles, K tiles); K innermost reduction axis.

    The xa scratch only depends on (i, k): it is built during the j == 0 sweep
    and reused (persistent VMEM scratch) for every other N tile of the same
    M tile.  Requires the j axis to be sequential (not megacore-sharded)."""
    j = pl.program_id(1)
    k = pl.program_id(2)

    @pl.when(k == 0)
    def _init_acc():
        acc_ref[...] = jnp.zeros_like(acc_ref)

    x = x_ref[...]                                    # (tm, tk), native dtype
    acc_ref[...] += jnp.dot(x, wT_ref[...],           # base GEMM partial
                            preferred_element_type=jnp.float32)

    @pl.when(jnp.logical_and(j == 0, k == 0))
    def _init_xa():
        xa_ref[...] = jnp.zeros_like(xa_ref)

    @pl.when(j == 0)
    def _lora_partial():                              # xa = x @ A.T, once per i
        xa_ref[...] += jnp.dot(x, aT_ref[...],
                               preferred_element_type=jnp.float32)

    @pl.when(k == pl.num_programs(2) - 1)
    def _finalize():
        # scaling already folded into bT; bias added once here.
        # NOTE: xa is cast to the streamed-parameter dtype before the rank
        # matmul (exact for f32 params; slight precision loss if bf16 params).
        lora = jnp.dot(xa_ref[...].astype(bT_ref.dtype), bT_ref[...],
                       preferred_element_type=jnp.float32)
        o_ref[...] = (acc_ref[...] + lora
                      + bias_ref[...].astype(jnp.float32)).astype(o_ref.dtype)


def _gemm_bias_kernel(x_ref, wT_ref, bias_ref, o_ref, acc_ref):
    """Merged-LoRA fast path: plain tiled GEMM + bias."""
    k = pl.program_id(2)

    @pl.when(k == 0)
    def _init():
        acc_ref[...] = jnp.zeros_like(acc_ref)

    acc_ref[...] += jnp.dot(x_ref[...], wT_ref[...],
                            preferred_element_type=jnp.float32)

    @pl.when(k == pl.num_programs(2) - 1)
    def _finalize():
        o_ref[...] = (acc_ref[...]
                      + bias_ref[...].astype(jnp.float32)).astype(o_ref.dtype)


def prepare_lora_params(weight, bias, matrix_A, matrix_B, *, lora_alpha, r,
                        tm=512, tn=512, tk=512, merge_lora=False,
                        param_dtype=None):
    """One-time parameter prep (hoisted out of the per-call path): transpose,
    fold scaling into B.T (or fold LoRA into W entirely), zero-pad K / N / r
    to tile-aligned shapes, optional dtype cast of the streamed operands."""
    out_dim, in_dim = weight.shape
    scaling = float(lora_alpha) / float(r)
    dtype = jnp.dtype(param_dtype) if param_dtype is not None else weight.dtype

    tk, k_pad = _pick_k_tile(in_dim, tk)
    tn, n_pad = _pick_tile(out_dim, tn, 128)
    r_pad = _round_up(r, 128)          # lane-dense rank dimension

    if merge_lora:
        # Strict eval-mode fast path: W_eff = W + scaling * B @ A (done once).
        weight = (weight.astype(jnp.float32)
                  + scaling * (matrix_B.astype(jnp.float32)
                               @ matrix_A.astype(jnp.float32))
                  ).astype(weight.dtype)

    wT = jnp.zeros((k_pad, n_pad), dtype).at[:in_dim, :out_dim].set(
        weight.T.astype(dtype))
    bias2d = jnp.zeros((1, n_pad), dtype).at[0, :out_dim].set(bias.astype(dtype))

    params = dict(wT=wT, bias=bias2d, merged=bool(merge_lora), dtype=dtype,
                  in_dim=in_dim, out_dim=out_dim, r_pad=r_pad,
                  tm=tm, tn=tn, tk=tk, k_pad=k_pad, n_pad=n_pad)
    if not merge_lora:
        aT = jnp.zeros((k_pad, r_pad), dtype).at[:in_dim, :r].set(
            matrix_A.T.astype(dtype))
        bT = jnp.zeros((r_pad, n_pad), dtype).at[:r, :out_dim].set(
            (matrix_B.T * scaling).astype(dtype))
        params.update(aT=aT, bT=bT)
    return params


def _vmem_limit_bytes(vmem_est):
    """Generation-aware scoped-VMEM limit (<= 75% of physical VMEM)."""
    try:
        cap = int(pltpu.get_tpu_info().vmem_capacity_bytes)
    except Exception:
        cap = 64 * 2**20              # conservative default (v7x per-TC VMEM)
    ceiling = min(int(0.75 * cap), 96 * 2**20)
    return int(min(max(2 * vmem_est, 32 * 2**20), ceiling))


def lora_linear(x, params):
    """x: (..., in_dim) -> (..., out_dim)."""
    *lead, in_dim = x.shape
    assert in_dim == params["in_dim"]
    out_dim = params["out_dim"]
    tn, tk = params["tn"], params["tk"]
    k_pad, n_pad = params["k_pad"], params["n_pad"]
    r_pad = params["r_pad"]
    dtype = params["dtype"]
    merged = params["merged"]

    m = 1
    for d in lead:
        m *= d
    x2d = x.reshape(m, in_dim).astype(dtype)

    tm, m_pad = _pick_tile(m, params["tm"], 8)
    if m_pad != m or k_pad != in_dim:
        # Lane-aligned in_dim (common case) needs at most an M-axis pad;
        # fully aligned shapes skip this copy entirely.
        x2d = jnp.pad(x2d, ((0, m_pad - m), (0, k_pad - in_dim)))

    grid = (m_pad // tm, n_pad // tn, k_pad // tk)
    itemsize = jnp.dtype(dtype).itemsize

    x_spec = pl.BlockSpec((tm, tk), lambda i, j, k: (i, k))
    w_spec = pl.BlockSpec((tk, tn), lambda i, j, k: (k, j))
    bias_spec = pl.BlockSpec((1, tn), lambda i, j, k: (0, j))
    out_spec = pl.BlockSpec((tm, tn), lambda i, j, k: (i, j))

    if merged:
        vmem_est = (2 * itemsize * (tm * tk + tk * tn + tn + tm * tn)
                    + 4 * tm * tn)
        flops = 2 * m_pad * k_pad * n_pad
        bytes_accessed = itemsize * (m_pad * k_pad + k_pad * n_pad + n_pad
                                     + m_pad * n_pad)
        out2d = pl.pallas_call(
            _gemm_bias_kernel,
            out_shape=jax.ShapeDtypeStruct((m_pad, n_pad), dtype),
            grid_spec=pltpu.PrefetchScalarGridSpec(
                num_scalar_prefetch=0,
                grid=grid,
                in_specs=[x_spec, w_spec, bias_spec],
                out_specs=out_spec,
                scratch_shapes=[pltpu.VMEM((tm, tn), jnp.float32)],
            ),
            compiler_params=pltpu.CompilerParams(
                dimension_semantics=("parallel", "parallel", "arbitrary"),
                vmem_limit_bytes=_vmem_limit_bytes(vmem_est),
            ),
            cost_estimate=pl.CostEstimate(
                flops=int(flops), transcendentals=0,
                bytes_accessed=int(bytes_accessed)),
        )(x2d, params["wT"], params["bias"])
    else:
        # A.T is only consumed on the first N tile; pin its block index to
        # (0, 0) for j > 0 so the pipeline stops re-streaming it from HBM.
        a_spec = pl.BlockSpec((tk, r_pad),
                              lambda i, j, k: (jnp.where(j == 0, k, 0), 0))
        b_spec = pl.BlockSpec((r_pad, tn), lambda i, j, k: (0, j))
        vmem_est = (2 * itemsize * (tm * tk + tk * tn + tk * r_pad
                                    + r_pad * tn + tn + tm * tn)
                    + 4 * (tm * tn + tm * r_pad))
        flops = (2 * m_pad * k_pad * n_pad             # base GEMM
                 + 2 * m_pad * k_pad * r_pad           # xa (once per M tile)
                 + 2 * m_pad * r_pad * n_pad)          # xa @ (scaling * B.T)
        bytes_accessed = itemsize * (m_pad * k_pad + k_pad * n_pad
                                     + k_pad * r_pad + r_pad * n_pad
                                     + n_pad + m_pad * n_pad)
        out2d = pl.pallas_call(
            _lora_linear_kernel,
            out_shape=jax.ShapeDtypeStruct((m_pad, n_pad), dtype),
            grid_spec=pltpu.PrefetchScalarGridSpec(
                num_scalar_prefetch=0,
                grid=grid,
                in_specs=[x_spec, w_spec, a_spec, b_spec, bias_spec],
                out_specs=out_spec,
                scratch_shapes=[
                    pltpu.VMEM((tm, tn), jnp.float32),     # base accumulator
                    pltpu.VMEM((tm, r_pad), jnp.float32),  # xa (persists over j)
                ],
            ),
            compiler_params=pltpu.CompilerParams(
                # j must stay sequential (not megacore-sharded): the xa scratch
                # populated at j == 0 is reused for j > 0 on the same core.
                dimension_semantics=("parallel", "arbitrary", "arbitrary"),
                vmem_limit_bytes=_vmem_limit_bytes(vmem_est),
            ),
            cost_estimate=pl.CostEstimate(
                flops=int(flops), transcendentals=0,
                bytes_accessed=int(bytes_accessed)),
        )(x2d, params["wT"], params["aT"], params["bT"], params["bias"])

    return out2d[:m, :out_dim].reshape(*lead, out_dim)


def _reference(x, weight, bias, matrix_A, matrix_B, *, lora_alpha, r):
    scaling = lora_alpha / r
    base = jnp.einsum("...i,oi->...o", x, weight) + bias
    xa = jnp.einsum("...i,ri->...r", x, matrix_A)
    lora = jnp.einsum("...r,or->...o", xa, matrix_B)
    return base + lora * scaling


def _init_params(key, in_dim, out_dim, r):
    kw, kb, ka, kbm = jax.random.split(key, 4)
    # nn.Linear default init: U(-1/sqrt(in_dim), 1/sqrt(in_dim))
    bound_w = 1.0 / math.sqrt(in_dim)
    weight = jax.random.uniform(kw, (out_dim, in_dim),
                                minval=-bound_w, maxval=bound_w,
                                dtype=jnp.float32)
    bias = jax.random.uniform(kb, (out_dim,),
                              minval=-bound_w, maxval=bound_w,
                              dtype=jnp.float32)
    # matrix_A: kaiming_uniform_(a=sqrt(5)), fan_in = in_dim
    gain = math.sqrt(2.0 / (1.0 + 5.0))
    bound_a = gain * math.sqrt(3.0 / in_dim)
    matrix_A = jax.random.uniform(ka, (r, in_dim),
                                  minval=-bound_a, maxval=bound_a,
                                  dtype=jnp.float32)
    # Module init zeros matrix_B; non-zero here so the LoRA path is exercised.
    matrix_B = 0.05 * jax.random.normal(kbm, (out_dim, r), dtype=jnp.float32)
    return weight, bias, matrix_A, matrix_B


if __name__ == "__main__":
    # --- Test 1: small shapes, separable and merged paths --------------------
    batch, seq, in_dim, out_dim, r = 2, 8, 32, 64, 8
    lora_alpha = 1.0
    kx, kp = jax.random.split(jax.random.PRNGKey(0))
    x = jax.random.normal(kx, (batch, seq, in_dim), dtype=jnp.float32)
    weight, bias, matrix_A, matrix_B = _init_params(kp, in_dim, out_dim, r)
    ref = _reference(x, weight, bias, matrix_A, matrix_B,
                     lora_alpha=lora_alpha, r=r)

    params = prepare_lora_params(weight, bias, matrix_A, matrix_B,
                                 lora_alpha=lora_alpha, r=r)
    out = jax.block_until_ready(lora_linear(x, params))
    assert out.shape == (batch, seq, out_dim)
    assert jnp.allclose(out, ref, atol=1e-4, rtol=1e-4), "mismatch (separable)"

    params_m = prepare_lora_params(weight, bias, matrix_A, matrix_B,
                                   lora_alpha=lora_alpha, r=r, merge_lora=True)
    out_m = jax.block_until_ready(lora_linear(x, params_m))
    assert out_m.shape == (batch, seq, out_dim)
    assert jnp.allclose(out_m, ref, atol=1e-4, rtol=1e-4), "mismatch (merged)"

    # --- Test 2: multi-tile grid (M/N/K tiling, xa reuse across N tiles) -----
    b2, s2, i2, o2, r2 = 2, 256, 1536, 640, 8
    kx2, kp2 = jax.random.split(jax.random.PRNGKey(1))
    x2 = jax.random.normal(kx2, (b2, s2, i2), dtype=jnp.float32)
    w2, bb2, a2, bm2 = _init_params(kp2, i2, o2, r2)
    ref2 = _reference(x2, w2, bb2, a2, bm2, lora_alpha=2.0, r=r2)

    params2 = prepare_lora_params(w2, bb2, a2, bm2, lora_alpha=2.0, r=r2)
    out2 = jax.block_until_ready(lora_linear(x2, params2))
    assert out2.shape == (b2, s2, o2)
    assert jnp.allclose(out2, ref2, atol=2e-2, rtol=2e-2), "mismatch (tiled)"

    print("KERNEL_OK")
</pallas_src>

<mosaic_0001>
module attributes {stable_mosaic.version = 11 : i64} {
  func.func @_lora_linear_kernel(%arg0: i32, %arg1: i32, %arg2: i32, %arg3: memref<16x128xf32, #tpu.memory_space<vmem>>, %arg4: memref<128x128xf32, #tpu.memory_space<vmem>>, %arg5: memref<128x128xf32, #tpu.memory_space<vmem>>, %arg6: memref<128x128xf32, #tpu.memory_space<vmem>>, %arg7: memref<1x128xf32, #tpu.memory_space<vmem>>, %arg8: memref<16x128xf32, #tpu.memory_space<vmem>>, %arg9: memref<16x128xf32, #tpu.memory_space<vmem>>, %arg10: memref<16x128xf32, #tpu.memory_space<vmem>>) attributes {dimension_semantics = [#tpu.dimension_semantics<parallel>, #tpu.dimension_semantics<arbitrary>, #tpu.dimension_semantics<arbitrary>], iteration_bounds = array<i64: 1, 1, 1>, scalar_prefetch = 0 : i64, scratch_operands = 2 : i64, tpu.core_type = #tpu.core_type<tc>, window_params = [{transform_indices = @transform_0, window_bounds = array<i64: 16, 128>}, {transform_indices = @transform_1, window_bounds = array<i64: 128, 128>}, {transform_indices = @transform_2, window_bounds = array<i64: 128, 128>}, {transform_indices = @transform_3, window_bounds = array<i64: 128, 128>}, {transform_indices = @transform_4, window_bounds = array<i64: 1, 128>}, {transform_indices = @transform_5, window_bounds = array<i64: 16, 128>}]} {
    %c0_i32 = arith.constant 0 : i32
    %0 = arith.cmpi eq, %arg2, %c0_i32 : i32
    %1 = arith.extui %0 : i1 to i32
    %c0_i32_0 = arith.constant 0 : i32
    %2 = arith.cmpi ne, %1, %c0_i32_0 : i32
    scf.if %2 {
      %cst_15 = arith.constant 0.000000e+00 : f32
      %20 = vector.broadcast %cst_15 : f32 to vector<16x128xf32>
      %c0_16 = arith.constant 0 : index
      %c0_17 = arith.constant 0 : index
      %21 = vector.load %arg9[%c0_16, %c0_17] : memref<16x128xf32, #tpu.memory_space<vmem>>, vector<16x128xf32>
      tpu.vector_store %arg9[%c0_16, %c0_17], %20 {strides = array<i32>} : memref<16x128xf32, #tpu.memory_space<vmem>>, vector<16x128xf32>,
    } else {
    }
    %c0 = arith.constant 0 : index
    %c0_1 = arith.constant 0 : index
    %3 = vector.load %arg3[%c0, %c0_1] : memref<16x128xf32, #tpu.memory_space<vmem>>, vector<16x128xf32>
    %c0_2 = arith.constant 0 : index
    %c0_3 = arith.constant 0 : index
    %4 = vector.load %arg9[%c0_2, %c0_3] : memref<16x128xf32, #tpu.memory_space<vmem>>, vector<16x128xf32>
    %c0_4 = arith.constant 0 : index
    %c0_5 = arith.constant 0 : index
    %5 = vector.load %arg4[%c0_4, %c0_5] : memref<128x128xf32, #tpu.memory_space<vmem>>, vector<128x128xf32>
    %cst = arith.constant dense<0.000000e+00> : vector<16x128xf32>
    %6 = tpu.matmul %3, %5, %cst {dimension_numbers = #tpu.dot_dimension_numbers<[1], [0], [0], [1], [0, 0, 1, 1], [], []>} : vector<16x128xf32>, vector<128x128xf32>, vector<16x128xf32> -> vector<16x128xf32>
    %7 = arith.addf %4, %6 : vector<16x128xf32>
    %c0_6 = arith.constant 0 : index
    %c0_7 = arith.constant 0 : index
    %8 = vector.load %arg9[%c0_6, %c0_7] : memref<16x128xf32, #tpu.memory_space<vmem>>, vector<16x128xf32>
    tpu.vector_store %arg9[%c0_6, %c0_7], %7 {strides = array<i32>} : memref<16x128xf32, #tpu.memory_space<vmem>>, vector<16x128xf32>,
    %c0_i32_8 = arith.constant 0 : i32
    %9 = arith.cmpi eq, %arg1, %c0_i32_8 : i32
    %c0_i32_9 = arith.constant 0 : i32
    %10 = arith.cmpi eq, %arg2, %c0_i32_9 : i32
    %11 = arith.andi %9, %10 : i1
    %12 = arith.extui %11 : i1 to i32
    %c0_i32_10 = arith.constant 0 : i32
    %13 = arith.cmpi ne, %12, %c0_i32_10 : i32
    scf.if %13 {
      %cst_15 = arith.constant 0.000000e+00 : f32
      %20 = vector.broadcast %cst_15 : f32 to vector<16x128xf32>
      %c0_16 = arith.constant 0 : index
      %c0_17 = arith.constant 0 : index
      %21 = vector.load %arg10[%c0_16, %c0_17] : memref<16x128xf32, #tpu.memory_space<vmem>>, vector<16x128xf32>
      tpu.vector_store %arg10[%c0_16, %c0_17], %20 {strides = array<i32>} : memref<16x128xf32, #tpu.memory_space<vmem>>, vector<16x128xf32>,
    } else {
    }
    %c0_i32_11 = arith.constant 0 : i32
    %14 = arith.cmpi eq, %arg1, %c0_i32_11 : i32
    %15 = arith.extui %14 : i1 to i32
    %c0_i32_12 = arith.constant 0 : i32
    %16 = arith.cmpi ne, %15, %c0_i32_12 : i32
    scf.if %16 {
      %c0_15 = arith.constant 0 : index
      %c0_16 = arith.constant 0 : index
      %20 = vector.load %arg10[%c0_15, %c0_16] : memref<16x128xf32, #tpu.memory_space<vmem>>, vector<16x128xf32>
      %c0_17 = arith.constant 0 : index
      %c0_18 = arith.constant 0 : index
      %21 = vector.load %arg5[%c0_17, %c0_18] : memref<128x128xf32, #tpu.memory_space<vmem>>, vector<128x128xf32>
      %cst_19 = arith.constant dense<0.000000e+00> : vector<16x128xf32>
      %22 = tpu.matmul %3, %21, %cst_19 {dimension_numbers = #tpu.dot_dimension_numbers<[1], [0], [0], [1], [0, 0, 1, 1], [], []>} : vector<16x128xf32>, vector<128x128xf32>, vector<16x128xf32> -> vector<16x128xf32>
      %23 = arith.addf %20, %22 : vector<16x128xf32>
      %c0_20 = arith.constant 0 : index
      %c0_21 = arith.constant 0 : index
      %24 = vector.load %arg10[%c0_20, %c0_21] : memref<16x128xf32, #tpu.memory_space<vmem>>, vector<16x128xf32>
      tpu.vector_store %arg10[%c0_20, %c0_21], %23 {strides = array<i32>} : memref<16x128xf32, #tpu.memory_space<vmem>>, vector<16x128xf32>,
    } else {
    }
    %c0_i32_13 = arith.constant 0 : i32
    %17 = arith.cmpi eq, %arg2, %c0_i32_13 : i32
    %18 = arith.extui %17 : i1 to i32
    %c0_i32_14 = arith.constant 0 : i32
    %19 = arith.cmpi ne, %18, %c0_i32_14 : i32
    scf.if %19 {
      %c0_15 = arith.constant 0 : index
      %c0_16 = arith.constant 0 : index
      %20 = vector.load %arg10[%c0_15, %c0_16] : memref<16x128xf32, #tpu.memory_space<vmem>>, vector<16x128xf32>
      %c0_17 = arith.constant 0 : index
      %c0_18 = arith.constant 0 : index
      %21 = vector.load %arg6[%c0_17, %c0_18] : memref<128x128xf32, #tpu.memory_space<vmem>>, vector<128x128xf32>
      %cst_19 = arith.constant dense<0.000000e+00> : vector<16x128xf32>
      %22 = tpu.matmul %20, %21, %cst_19 {dimension_numbers = #tpu.dot_dimension_numbers<[1], [0], [0], [1], [0, 0, 1, 1], [], []>} : vector<16x128xf32>, vector<128x128xf32>, vector<16x128xf32> -> vector<16x128xf32>
      %c0_20 = arith.constant 0 : index
      %c0_21 = arith.constant 0 : index
      %23 = vector.load %arg9[%c0_20, %c0_21] : memref<16x128xf32, #tpu.memory_space<vmem>>, vector<16x128xf32>
      %24 = arith.addf %23, %22 : vector<16x128xf32>
      %c0_22 = arith.constant 0 : index
      %c0_23 = arith.constant 0 : index
      %25 = vector.load %arg7[%c0_22, %c0_23] : memref<1x128xf32, #tpu.memory_space<vmem>>, vector<1x128xf32>
      %26 = vector.broadcast %25 : vector<1x128xf32> to vector<16x128xf32>
      %27 = arith.addf %24, %26 : vector<16x128xf32>
      %c0_24 = arith.constant 0 : index
      %c0_25 = arith.constant 0 : index
      %28 = vector.load %arg8[%c0_24, %c0_25] : memref<16x128xf32, #tpu.memory_space<vmem>>, vector<16x128xf32>
      tpu.vector_store %arg8[%c0_24, %c0_25], %27 {strides = array<i32>} : memref<16x128xf32, #tpu.memory_space<vmem>>, vector<16x128xf32>,
    } else {
    }
    return
  }
  func.func @transform_0(%arg0: i32, %arg1: i32, %arg2: i32) -> (i32, i32) {
    %c0_i32 = arith.constant 0 : i32
    return %arg0, %arg2 : i32, i32
  }
  func.func @transform_1(%arg0: i32, %arg1: i32, %arg2: i32) -> (i32, i32) {
    %c0_i32 = arith.constant 0 : i32
    return %arg2, %arg1 : i32, i32
  }
  func.func @transform_2(%arg0: i32, %arg1: i32, %arg2: i32) -> (i32, i32) {
    %c0_i32 = arith.constant 0 : i32
    %0 = arith.cmpi eq, %arg1, %c0_i32 : i32
    %c0_i32_0 = arith.constant 0 : i32
    %1 = arith.select %0, %arg2, %c0_i32_0 : i32
    %c0_i32_1 = arith.constant 0 : i32
    %c0_i32_2 = arith.constant 0 : i32
    return %1, %c0_i32_1 : i32, i32
  }
  func.func @transform_3(%arg0: i32, %arg1: i32, %arg2: i32) -> (i32, i32) {
    %c0_i32 = arith.constant 0 : i32
    %c0_i32_0 = arith.constant 0 : i32
    return %c0_i32, %arg1 : i32, i32
  }
  func.func @transform_4(%arg0: i32, %arg1: i32, %arg2: i32) -> (i32, i32) {
    %c0_i32 = arith.constant 0 : i32
    %c0_i32_0 = arith.constant 0 : i32
    return %c0_i32, %arg1 : i32, i32
  }
  func.func @transform_5(%arg0: i32, %arg1: i32, %arg2: i32) -> (i32, i32) {
    %c0_i32 = arith.constant 0 : i32
    return %arg0, %arg1 : i32, i32
  }
}

</mosaic_0001>

<llo_original>
// kernel: tpu_custom_call.1
$region0: #{tpu_custom_call.1}
  #allocation0 [shape = 'u32[]', space=smem, size = 0x4, offset = 0x4, fixed_abs, tag = 'smem constant byte address 0x4 - core index']
  #allocation1 [shape = 'u32[144,128]{1,0:T(1,128)}', space=vmem, size = 0x12000, scoped, tag = 'internal scratch']
  #allocation2 [shape = 'f32[16,128]{1,0:T(8,128)}', space=vmem, size = 0x2000, scoped, tag = 'scratch operand']
  #allocation3 [shape = 'f32[16,128]{1,0:T(8,128)}', space=vmem, size = 0x2000, scoped, tag = 'scratch operand']
  %s0 = inlined_call_operand.hbm [shape: f32[16,128], index: 0, kind: input, shape index: {}]
  %s1 = inlined_call_operand.hbm [shape: f32[128,128], index: 1, kind: input, shape index: {}]
  %s2 = inlined_call_operand.hbm [shape: f32[128,128], index: 2, kind: input, shape index: {}]
  %s3 = inlined_call_operand.hbm [shape: f32[128,128], index: 3, kind: input, shape index: {}]
  %s4 = inlined_call_operand.vmem [shape: f32[1,128], index: 4, kind: input, shape index: {}]
  %s5 = inlined_call_operand.hbm [shape: f32[16,128], index: 5, kind: output, shape index: {}]
  %s6 = sld [smem:[#allocation0]]
  $region62: #{tpu_custom_call.1} parent=0
    _
  %s8 = ssub.s32 1, %s6
  %s9 = scalar_select 0, %s8, %s6
  $region1: #{tpu_custom_call.1} parent=0
    #allocation4 [shape = 'u8[8192]{0}', space=vmem, size = 0x2000, scoped, tag = 'input window, operand 0, single buffered']
    #allocation5 [shape = 's32[1]{0}', space=sflag, size = 0x4, scoped, tag = 'scoped memory for tpu_custom_call.1']
    #allocation6 [shape = 's32[1]{0}', space=sflag, size = 0x4, scoped, tag = 'scoped memory for tpu_custom_call.1']
    #allocation7 [shape = 'u8[65536]{0}', space=vmem, size = 0x10000, scoped, tag = 'input window, operand 1, single buffered']
    #allocation8 [shape = 's32[1]{0}', space=sflag, size = 0x4, scoped, tag = 'scoped memory for tpu_custom_call.1']
    #allocation9 [shape = 'u8[65536]{0}', space=vmem, size = 0x10000, scoped, tag = 'input window, operand 2, single buffered']
    #allocation10 [shape = 'u8[65536]{0}', space=vmem, size = 0x10000, scoped, tag = 'input window, operand 3, single buffered']
    #allocation11 [shape = 's32[1]{0}', space=sflag, size = 0x4, scoped, tag = 'scoped memory for tpu_custom_call.1']
    #allocation12 [shape = 'u8[8192]{0}', space=vmem, size = 0x2000, scoped, tag = 'output window, operand 0, single buffered']
    %10 = vsyncpa [#allocation5], 0
    %11 = vsyncpa [#allocation8], 0
    %12 = vsyncpa [#allocation11], 0
    %13 = vsyncpa [#allocation6], 0
    // Predicated region
    $region2: #{tpu_custom_call.1} parent=1 // pred_check
      _
    $region3: #{tpu_custom_call.1} parent=1 // pred_check_branch
      %15 = sbr.rel (0) target = $region5
    $region4: #{tpu_custom_call.1} parent=1 // pred_region
      %s17 = ssub.s32 256, 256
      %18 = vsyncadd [#allocation5], %s17
      %s19 = sshll.u32 [#allocation4], 4
      %s20 = int_to_ptr.vmem [resolvable:$true] %s19
      %25 = dma.hbm_to_vmem [thread:$0]  %s0, 256, %s20, [#allocation5], 128, 128, 8
    $region5: #{tpu_custom_call.1} parent=1 // pred_fallthru
      _
    // Predicated region
    $region6: #{tpu_custom_call.1} parent=1 // pred_check
      _
    $region7: #{tpu_custom_call.1} parent=1 // pred_check_branch
      %27 = sbr.rel (0) target = $region9
    $region8: #{tpu_custom_call.1} parent=1 // pred_region
      %s29 = ssub.s32 2048, 2048
      %30 = vsyncadd [#allocation8], %s29
      %s31 = sshll.u32 [#allocation7], 4
      %s32 = int_to_ptr.vmem [resolvable:$true] %s31
      %37 = dma.hbm_to_vmem [thread:$0]  %s1, 2048, %s32, [#allocation8], 128, 128, 8
    $region9: #{tpu_custom_call.1} parent=1 // pred_fallthru
      _
    // Predicated region
    $region10: #{tpu_custom_call.1} parent=1 // pred_check
      _
    $region11: #{tpu_custom_call.1} parent=1 // pred_check_branch
      %39 = sbr.rel (0) target = $region13
    $region12: #{tpu_custom_call.1} parent=1 // pred_region
      %p40 = scmp.eq.s32.totalorder 0, 0
      %s41 = scalar_select %p40, 0, 0
      %s42 = smul.u32 16, %s41
      %s44 = ssub.s32 2048, 2048
      %45 = vsyncadd [#allocation8], %s44
      %s46 = smul.addr %s42, 128
      %s47 = scalar_lea.hbm %s2, %s46
      %s48 = sshll.u32 [#allocation9], 4
      %s49 = int_to_ptr.vmem [resolvable:$true] %s48
      %54 = dma.hbm_to_vmem [thread:$0]  %s47, 2048, %s49, [#allocation8], 128, 128, 8
    $region13: #{tpu_custom_call.1} parent=1 // pred_fallthru
      _
    // Predicated region
    $region14: #{tpu_custom_call.1} parent=1 // pred_check
      _
    $region15: #{tpu_custom_call.1} parent=1 // pred_check_branch
      %56 = sbr.rel (0) target = $region17
    $region16: #{tpu_custom_call.1} parent=1 // pred_region
      %s58 = ssub.s32 2048, 2048
      %59 = vsyncadd [#allocation11], %s58
      %s60 = sshll.u32 [#allocation10], 4
      %s61 = int_to_ptr.vmem [resolvable:$true] %s60
      %66 = dma.hbm_to_vmem [thread:$0]  %s3, 2048, %s61, [#allocation11], 128, 128, 8
    $region17: #{tpu_custom_call.1} parent=1 // pred_fallthru
      _
    // Predicated region
    $region18: #{tpu_custom_call.1} parent=1 // pred_check
      _
    $region19: #{tpu_custom_call.1} parent=1 // pred_check_branch
      %68 = sbr.rel (0) target = $region21
    $region20: #{tpu_custom_call.1} parent=1 // pred_region
      _
    $region21: #{tpu_custom_call.1} parent=1 // pred_fallthru
      _
    // Predicated region
    $region22: #{tpu_custom_call.1} parent=1 // pred_check
      _
    $region23: #{tpu_custom_call.1} parent=1 // pred_check_branch
      %70 = sbr.rel (0) target = $region25
    $region24: #{tpu_custom_call.1} parent=1 // pred_region
      %71 = dma.done [#allocation5], 256
    $region25: #{tpu_custom_call.1} parent=1 // pred_fallthru
      _
    // Predicated region
    $region26: #{tpu_custom_call.1} parent=1 // pred_check
      _
    $region27: #{tpu_custom_call.1} parent=1 // pred_check_branch
      %73 = sbr.rel (0) target = $region29
    $region28: #{tpu_custom_call.1} parent=1 // pred_region
      %74 = dma.done [#allocation8], 2048
    $region29: #{tpu_custom_call.1} parent=1 // pred_fallthru
      _
    // Predicated region
    $region30: #{tpu_custom_call.1} parent=1 // pred_check
      _
    $region31: #{tpu_custom_call.1} parent=1 // pred_check_branch
      %76 = sbr.rel (0) target = $region33
    $region32: #{tpu_custom_call.1} parent=1 // pred_region
      %77 = dma.done [#allocation8], 2048
    $region33: #{tpu_custom_call.1} parent=1 // pred_fallthru
      _
    // Predicated region
    $region34: #{tpu_custom_call.1} parent=1 // pred_check
      _
    $region35: #{tpu_custom_call.1} parent=1 // pred_check_branch
      %79 = sbr.rel (0) target = $region37
    $region36: #{tpu_custom_call.1} parent=1 // pred_region
      %80 = dma.done [#allocation11], 2048
    $region37: #{tpu_custom_call.1} parent=1 // pred_fallthru
      _
    %p81 = scmp.eq.s32.totalorder 0, 0
    %s82 = scalar_select %p81, 0, 0
    %s83 = smul.u32 16, %s82
    %p84 = scmp.eq.s32.totalorder 0, 0
    // Predicated region
    $region38: #{tpu_custom_call.1} parent=1 // pred_check
      %p85 = pneg %p84
    $region39: #{tpu_custom_call.1} parent=1 // pred_check_branch
      %87 = sbr.rel (%p85) target = $region41
    $region40: #{tpu_custom_call.1} parent=1 // pred_region
      %88 = vst [vmem:[#allocation2] sm:$0xff] 0.0
      %89 = vst [vmem:[#allocation2 + $0x8] sm:$0xff] 0.0
    $region41: #{tpu_custom_call.1} parent=1 // pred_fallthru
      _
    %v90 = vld [vmem:[#allocation4] sm:$0xff]
    %v91 = vld [vmem:[#allocation4 + $0x8] sm:$0xff]
    %v92 = vld [vmem:[#allocation2] sm:$0xff]
    %v93 = vld [vmem:[#allocation2 + $0x8] sm:$0xff]
    %v94 = vld [vmem:[#allocation7] sm:$0xff]
    %v95 = vld [vmem:[#allocation7 + $0x8] sm:$0xff]
    %v96 = vld [vmem:[#allocation7 + $0x10] sm:$0xff]
    %v97 = vld [vmem:[#allocation7 + $0x18] sm:$0xff]
    %v98 = vld [vmem:[#allocation7 + $0x20] sm:$0xff]
    %v99 = vld [vmem:[#allocation7 + $0x28] sm:$0xff]
    %v100 = vld [vmem:[#allocation7 + $0x30] sm:$0xff]
    %v101 = vld [vmem:[#allocation7 + $0x38] sm:$0xff]
    %v102 = vld [vmem:[#allocation7 + $0x40] sm:$0xff]
    %v103 = vld [vmem:[#allocation7 + $0x48] sm:$0xff]
    %v104 = vld [vmem:[#allocation7 + $0x50] sm:$0xff]
    %v105 = vld [vmem:[#allocation7 + $0x58] sm:$0xff]
    %v106 = vld [vmem:[#allocation7 + $0x60] sm:$0xff]
    %v107 = vld [vmem:[#allocation7 + $0x68] sm:$0xff]
    %v108 = vld [vmem:[#allocation7 + $0x70] sm:$0xff]
    %v109 = vld [vmem:[#allocation7 + $0x78] sm:$0xff]
    %110 = vmatprep.subr.mxu0 0.0
    %111 = vmatpush1.msra.mxu0 %v94
    %112 = vmatprep.subr.mxu0 0.0
    %113 = vmatpush1.msra.mxu0 %v95
    %114 = vmatprep.subr.mxu0 0.0
    %115 = vmatpush1.msra.mxu0 %v96
    %116 = vmatprep.subr.mxu0 0.0
    %117 = vmatpush1.msra.mxu0 %v97
    %118 = vmatprep.subr.mxu0 0.0
    %119 = vmatpush1.msra.mxu0 %v98
    %120 = vmatprep.subr.mxu0 0.0
    %121 = vmatpush1.msra.mxu0 %v99
    %122 = vmatprep.subr.mxu0 0.0
    %123 = vmatpush1.msra.mxu0 %v100
    %124 = vmatprep.subr.mxu0 0.0
    %125 = vmatpush1.msra.mxu0 %v101
    %126 = vmatprep.subr.mxu0 0.0
    %127 = vmatpush1.msra.mxu0 %v102
    %128 = vmatprep.subr.mxu0 0.0
    %129 = vmatpush1.msra.mxu0 %v103
    %130 = vmatprep.subr.mxu0 0.0
    %131 = vmatpush1.msra.mxu0 %v104
    %132 = vmatprep.subr.mxu0 0.0
    %133 = vmatpush1.msra.mxu0 %v105
    %134 = vmatprep.subr.mxu0 0.0
    %135 = vmatpush1.msra.mxu0 %v106
    %136 = vmatprep.subr.mxu0 0.0
    %137 = vmatpush1.msra.mxu0 %v107
    %138 = vmatprep.subr.mxu0 0.0
    %139 = vmatpush1.msra.mxu0 %v108
    %140 = vmatprep.subr.mxu0 0.0
    %141 = vmatpush1.msra.mxu0 %v109
    %142 = vmatprep.subr.mxu0 0.0
    %143 = vmatpush1.msra.mxu0 0.0
    %144 = vmatprep.subr.mxu0 0.0
    %145 = vmatpush1.msra.mxu0 0.0
    %146 = vmatprep.subr.mxu0 0.0
    %147 = vmatpush1.msra.mxu0 0.0
    %148 = vmatprep.subr.mxu0 0.0
    %149 = vmatpush1.msra.mxu0 0.0
    %150 = vmatprep.subr.mxu0 0.0
    %151 = vmatpush1.msra.mxu0 0.0
    %152 = vmatprep.subr.mxu0 0.0
    %153 = vmatpush1.msra.mxu0 0.0
    %154 = vmatprep.subr.mxu0 0.0
    %155 = vmatpush1.msra.mxu0 0.0
    %156 = vmatprep.subr.mxu0 0.0
    %157 = vmatpush1.msra.mxu0 0.0
    %158 = vmatprep.subr.mxu0 0.0
    %159 = vmatpush1.msra.mxu0 0.0
    %160 = vmatprep.subr.mxu0 0.0
    %161 = vmatpush1.msra.mxu0 0.0
    %162 = vmatprep.subr.mxu0 0.0
    %163 = vmatpush1.msra.mxu0 0.0
    %164 = vmatprep.subr.mxu0 0.0
    %165 = vmatpush1.msra.mxu0 0.0
    %166 = vmatprep.subr.mxu0 0.0
    %167 = vmatpush1.msra.mxu0 0.0
    %168 = vmatprep.subr.mxu0 0.0
    %169 = vmatpush1.msra.mxu0 0.0
    %170 = vmatprep.subr.mxu0 0.0
    %171 = vmatpush1.msra.mxu0 0.0
    %172 = vmatprep.subr.mxu0 0.0
    %173 = vmatpush1.msra.mxu0 0.0
    %174 = vmatprep.mubr.f32.mxu0 0.0
    %175 = vmatmul.mubr.f32.gmra.mrb[0].mxu0 %v90
    %v176 = vpop.f32.mrb[0].mxu0
    %v177 = vadd.f32 0.0, %v176
    %v178 = vpop.f32.mrb[0].mxu0
    %179 = vmatprep.mubr.f32.mxu0 0.0
    %180 = vmatmul.mubr.f32.gmra.mrb[0].mxu0 %v91
    %v181 = vpop.f32.mrb[0].mxu0
    %v182 = vadd.f32 0.0, %v181
    %v183 = vpop.f32.mrb[0].mxu0
    %184 = vdwg.mxu0
    %v185 = vadd.f32 %v92, %v177
    %v186 = vadd.f32 %v93, %v182
    %187 = vst [vmem:[#allocation2] sm:$0xff] %v185
    %188 = vst [vmem:[#allocation2 + $0x8] sm:$0xff] %v186
    %p189 = scmp.eq.s32.totalorder 0, 0
    %p190 = pnand %p189, %p84
    %p191 = pneg %p190
    // Predicated region
    $region42: #{tpu_custom_call.1} parent=1 // pred_check
      _
    $region43: #{tpu_custom_call.1} parent=1 // pred_check_branch
      %193 = sbr.rel (%p190) target = $region45
    $region44: #{tpu_custom_call.1} parent=1 // pred_region
      %194 = vst [vmem:[#allocation3] sm:$0xff] 0.0
      %195 = vst [vmem:[#allocation3 + $0x8] sm:$0xff] 0.0
    $region45: #{tpu_custom_call.1} parent=1 // pred_fallthru
      _
    // Predicated region
    $region46: #{tpu_custom_call.1} parent=1 // pred_check
      %p196 = pneg %p189
    $region47: #{tpu_custom_call.1} parent=1 // pred_check_branch
      %198 = sbr.rel (%p196) target = $region49
    $region48: #{tpu_custom_call.1} parent=1 // pred_region
      %v199 = vld [vmem:[#allocation3] sm:$0xff]
      %v200 = vld [vmem:[#allocation3 + $0x8] sm:$0xff]
      %v201 = vld [vmem:[#allocation9] sm:$0xff]
      %v202 = vld [vmem:[#allocation9 + $0x8] sm:$0xff]
      %v203 = vld [vmem:[#allocation9 + $0x10] sm:$0xff]
      %v204 = vld [vmem:[#allocation9 + $0x18] sm:$0xff]
      %v205 = vld [vmem:[#allocation9 + $0x20] sm:$0xff]
      %v206 = vld [vmem:[#allocation9 + $0x28] sm:$0xff]
      %v207 = vld [vmem:[#allocation9 + $0x30] sm:$0xff]
      %v208 = vld [vmem:[#allocation9 + $0x38] sm:$0xff]
      %v209 = vld [vmem:[#allocation9 + $0x40] sm:$0xff]
      %v210 = vld [vmem:[#allocation9 + $0x48] sm:$0xff]
      %v211 = vld [vmem:[#allocation9 + $0x50] sm:$0xff]
      %v212 = vld [vmem:[#allocation9 + $0x58] sm:$0xff]
      %v213 = vld [vmem:[#allocation9 + $0x60] sm:$0xff]
      %v214 = vld [vmem:[#allocation9 + $0x68] sm:$0xff]
      %v215 = vld [vmem:[#allocation9 + $0x70] sm:$0xff]
      %v216 = vld [vmem:[#allocation9 + $0x78] sm:$0xff]
      %217 = vmatprep.subr.mxu0 0.0
      %218 = vmatpush1.msra.mxu0 %v201
      %219 = vmatprep.subr.mxu0 0.0
      %220 = vmatpush1.msra.mxu0 %v202
      %221 = vmatprep.subr.mxu0 0.0
      %222 = vmatpush1.msra.mxu0 %v203
      %223 = vmatprep.subr.mxu0 0.0
      %224 = vmatpush1.msra.mxu0 %v204
      %225 = vmatprep.subr.mxu0 0.0
      %226 = vmatpush1.msra.mxu0 %v205
      %227 = vmatprep.subr.mxu0 0.0
      %228 = vmatpush1.msra.mxu0 %v206
      %229 = vmatprep.subr.mxu0 0.0
      %230 = vmatpush1.msra.mxu0 %v207
      %231 = vmatprep.subr.mxu0 0.0
      %232 = vmatpush1.msra.mxu0 %v208
      %233 = vmatprep.subr.mxu0 0.0
      %234 = vmatpush1.msra.mxu0 %v209
      %235 = vmatprep.subr.mxu0 0.0
      %236 = vmatpush1.msra.mxu0 %v210
      %237 = vmatprep.subr.mxu0 0.0
      %238 = vmatpush1.msra.mxu0 %v211
      %239 = vmatprep.subr.mxu0 0.0
      %240 = vmatpush1.msra.mxu0 %v212
      %241 = vmatprep.subr.mxu0 0.0
      %242 = vmatpush1.msra.mxu0 %v213
      %243 = vmatprep.subr.mxu0 0.0
      %244 = vmatpush1.msra.mxu0 %v214
      %245 = vmatprep.subr.mxu0 0.0
      %246 = vmatpush1.msra.mxu0 %v215
      %247 = vmatprep.subr.mxu0 0.0
      %248 = vmatpush1.msra.mxu0 %v216
      %249 = vmatprep.subr.mxu0 0.0
      %250 = vmatpush1.msra.mxu0 0.0
      %251 = vmatprep.subr.mxu0 0.0
      %252 = vmatpush1.msra.mxu0 0.0
      %253 = vmatprep.subr.mxu0 0.0
      %254 = vmatpush1.msra.mxu0 0.0
      %255 = vmatprep.subr.mxu0 0.0
      %256 = vmatpush1.msra.mxu0 0.0
      %257 = vmatprep.subr.mxu0 0.0
      %258 = vmatpush1.msra.mxu0 0.0
      %259 = vmatprep.subr.mxu0 0.0
      %260 = vmatpush1.msra.mxu0 0.0
      %261 = vmatprep.subr.mxu0 0.0
      %262 = vmatpush1.msra.mxu0 0.0
      %263 = vmatprep.subr.mxu0 0.0
      %264 = vmatpush1.msra.mxu0 0.0
      %265 = vmatprep.subr.mxu0 0.0
      %266 = vmatpush1.msra.mxu0 0.0
      %267 = vmatprep.subr.mxu0 0.0
      %268 = vmatpush1.msra.mxu0 0.0
      %269 = vmatprep.subr.mxu0 0.0
      %270 = vmatpush1.msra.mxu0 0.0
      %271 = vmatprep.subr.mxu0 0.0
      %272 = vmatpush1.msra.mxu0 0.0
      %273 = vmatprep.subr.mxu0 0.0
      %274 = vmatpush1.msra.mxu0 0.0
      %275 = vmatprep.subr.mxu0 0.0
      %276 = vmatpush1.msra.mxu0 0.0
      %277 = vmatprep.subr.mxu0 0.0
      %278 = vmatpush1.msra.mxu0 0.0
      %279 = vmatprep.subr.mxu0 0.0
      %280 = vmatpush1.msra.mxu0 0.0
      %281 = vmatprep.mubr.f32.mxu0 0.0
      %282 = vmatmul.mubr.f32.gmra.mrb[0].mxu0 %v90
      %v283 = vpop.f32.mrb[0].mxu0
      %v284 = vadd.f32 0.0, %v283
      %v285 = vpop.f32.mrb[0].mxu0
      %286 = vmatprep.mubr.f32.mxu0 0.0
      %287 = vmatmul.mubr.f32.gmra.mrb[0].mxu0 %v91
      %v288 = vpop.f32.mrb[0].mxu0
      %v289 = vadd.f32 0.0, %v288
      %v290 = vpop.f32.mrb[0].mxu0
      %291 = vdwg.mxu0
      %v292 = vadd.f32 %v199, %v284
      %v293 = vadd.f32 %v200, %v289
      %294 = vst [vmem:[#allocation3] sm:$0xff] %v292
      %295 = vst [vmem:[#allocation3 + $0x8] sm:$0xff] %v293
    $region49: #{tpu_custom_call.1} parent=1 // pred_fallthru
      _
    // Predicated region
    $region50: #{tpu_custom_call.1} parent=1 // pred_check
      %p296 = pneg %p84
    $region51: #{tpu_custom_call.1} parent=1 // pred_check_branch
      %298 = sbr.rel (%p296) target = $region53
    $region52: #{tpu_custom_call.1} parent=1 // pred_region
      %v299 = vld [vmem:[#allocation3] sm:$0xff]
      %v300 = vld [vmem:[#allocation3 + $0x8] sm:$0xff]
      %v301 = vld [vmem:[#allocation10] sm:$0xff]
      %v302 = vld [vmem:[#allocation10 + $0x8] sm:$0xff]
      %v303 = vld [vmem:[#allocation10 + $0x10] sm:$0xff]
      %v304 = vld [vmem:[#allocation10 + $0x18] sm:$0xff]
      %v305 = vld [vmem:[#allocation10 + $0x20] sm:$0xff]
      %v306 = vld [vmem:[#allocation10 + $0x28] sm:$0xff]
      %v307 = vld [vmem:[#allocation10 + $0x30] sm:$0xff]
      %v308 = vld [vmem:[#allocation10 + $0x38] sm:$0xff]
      %v309 = vld [vmem:[#allocation10 + $0x40] sm:$0xff]
      %v310 = vld [vmem:[#allocation10 + $0x48] sm:$0xff]
      %v311 = vld [vmem:[#allocation10 + $0x50] sm:$0xff]
      %v312 = vld [vmem:[#allocation10 + $0x58] sm:$0xff]
      %v313 = vld [vmem:[#allocation10 + $0x60] sm:$0xff]
      %v314 = vld [vmem:[#allocation10 + $0x68] sm:$0xff]
      %v315 = vld [vmem:[#allocation10 + $0x70] sm:$0xff]
      %v316 = vld [vmem:[#allocation10 + $0x78] sm:$0xff]
      %317 = vmatprep.subr.mxu0 0.0
      %318 = vmatpush1.msra.mxu0 %v301
      %319 = vmatprep.subr.mxu0 0.0
      %320 = vmatpush1.msra.mxu0 %v302
      %321 = vmatprep.subr.mxu0 0.0
      %322 = vmatpush1.msra.mxu0 %v303
      %323 = vmatprep.subr.mxu0 0.0
      %324 = vmatpush1.msra.mxu0 %v304
      %325 = vmatprep.subr.mxu0 0.0
      %326 = vmatpush1.msra.mxu0 %v305
      %327 = vmatprep.subr.mxu0 0.0
      %328 = vmatpush1.msra.mxu0 %v306
      %329 = vmatprep.subr.mxu0 0.0
      %330 = vmatpush1.msra.mxu0 %v307
      %331 = vmatprep.subr.mxu0 0.0
      %332 = vmatpush1.msra.mxu0 %v308
      %333 = vmatprep.subr.mxu0 0.0
      %334 = vmatpush1.msra.mxu0 %v309
      %335 = vmatprep.subr.mxu0 0.0
      %336 = vmatpush1.msra.mxu0 %v310
      %337 = vmatprep.subr.mxu0 0.0
      %338 = vmatpush1.msra.mxu0 %v311
      %339 = vmatprep.subr.mxu0 0.0
      %340 = vmatpush1.msra.mxu0 %v312
      %341 = vmatprep.subr.mxu0 0.0
      %342 = vmatpush1.msra.mxu0 %v313
      %343 = vmatprep.subr.mxu0 0.0
      %344 = vmatpush1.msra.mxu0 %v314
      %345 = vmatprep.subr.mxu0 0.0
      %346 = vmatpush1.msra.mxu0 %v315
      %347 = vmatprep.subr.mxu0 0.0
      %348 = vmatpush1.msra.mxu0 %v316
      %349 = vmatprep.subr.mxu0 0.0
      %350 = vmatpush1.msra.mxu0 0.0
      %351 = vmatprep.subr.mxu0 0.0
      %352 = vmatpush1.msra.mxu0 0.0
      %353 = vmatprep.subr.mxu0 0.0
      %354 = vmatpush1.msra.mxu0 0.0
      %355 = vmatprep.subr.mxu0 0.0
      %356 = vmatpush1.msra.mxu0 0.0
      %357 = vmatprep.subr.mxu0 0.0
      %358 = vmatpush1.msra.mxu0 0.0
      %359 = vmatprep.subr.mxu0 0.0
      %360 = vmatpush1.msra.mxu0 0.0
      %361 = vmatprep.subr.mxu0 0.0
      %362 = vmatpush1.msra.mxu0 0.0
      %363 = vmatprep.subr.mxu0 0.0
      %364 = vmatpush1.msra.mxu0 0.0
      %365 = vmatprep.subr.mxu0 0.0
      %366 = vmatpush1.msra.mxu0 0.0
      %367 = vmatprep.subr.mxu0 0.0
      %368 = vmatpush1.msra.mxu0 0.0
      %369 = vmatprep.subr.mxu0 0.0
      %370 = vmatpush1.msra.mxu0 0.0
      %371 = vmatprep.subr.mxu0 0.0
      %372 = vmatpush1.msra.mxu0 0.0
      %373 = vmatprep.subr.mxu0 0.0
      %374 = vmatpush1.msra.mxu0 0.0
      %375 = vmatprep.subr.mxu0 0.0
      %376 = vmatpush1.msra.mxu0 0.0
      %377 = vmatprep.subr.mxu0 0.0
      %378 = vmatpush1.msra.mxu0 0.0
      %379 = vmatprep.subr.mxu0 0.0
      %380 = vmatpush1.msra.mxu0 0.0
      %381 = vmatprep.mubr.f32.mxu0 0.0
      %382 = vmatmul.mubr.f32.gmra.mrb[0].mxu0 %v299
      %v383 = vpop.f32.mrb[0].mxu0
      %v384 = vadd.f32 0.0, %v383
      %v385 = vpop.f32.mrb[0].mxu0
      %386 = vmatprep.mubr.f32.mxu0 0.0
      %387 = vmatmul.mubr.f32.gmra.mrb[0].mxu0 %v300
      %v388 = vpop.f32.mrb[0].mxu0
      %v389 = vadd.f32 0.0, %v388
      %v390 = vpop.f32.mrb[0].mxu0
      %391 = vdwg.mxu0
      %v392 = vld [vmem:[#allocation2] sm:$0xff]
      %v393 = vld [vmem:[#allocation2 + $0x8] sm:$0xff]
      %v394 = vadd.f32 %v392, %v384
      %v395 = vadd.f32 %v393, %v389
      %v396 = vld [vmem:[%s4] sm:$0x1]
      %v398 = vlaneseq
      %v399 = vshrl.u32 %v398, 7
      %v400 = vsub.s32 0, %v399
      %v401 = vrot.slane %v396, %v400
      %v403 = vadd.f32 %v394, %v401
      %v404 = vadd.f32 %v395, %v401
      %405 = vst [vmem:[#allocation12] sm:$0xff] %v403
      %406 = vst [vmem:[#allocation12 + $0x8] sm:$0xff] %v404
    $region53: #{tpu_custom_call.1} parent=1 // pred_fallthru
      _
    // Predicated region
    $region54: #{tpu_custom_call.1} parent=1 // pred_check
      _
    $region55: #{tpu_custom_call.1} parent=1 // pred_check_branch
      %408 = sbr.rel (0) target = $region57
    $region56: #{tpu_custom_call.1} parent=1 // pred_region
      %s410 = ssub.s32 256, 256
      %411 = vsyncadd [#allocation6], %s410
      %s412 = sshll.u32 [#allocation12], 4
      %s413 = int_to_ptr.vmem [resolvable:$true] %s412
      %418 = dma.vmem_to_hbm [thread:$0]  %s413, 256, %s5, [#allocation6], 128, 128, 8
    $region57: #{tpu_custom_call.1} parent=1 // pred_fallthru
      _
    // Predicated region
    $region58: #{tpu_custom_call.1} parent=1 // pred_check
      _
    $region59: #{tpu_custom_call.1} parent=1 // pred_check_branch
      %420 = sbr.rel (0) target = $region61
    $region60: #{tpu_custom_call.1} parent=1 // pred_region
      %421 = dma.done [#allocation6], 256
    $region61: #{tpu_custom_call.1} parent=1 // pred_fallthru
      _
    %422 = vsyncpa [#allocation5], 1
    %423 = vsyncpa [#allocation8], 1
    %424 = vsyncpa [#allocation11], 1
    %425 = vsyncpa [#allocation6], 1

</llo_original>
